<compile_context>
chip_gen: v7x
topology: tpu7x:2x2x1
jax: 0.10.0
libtpu: 0.0.40
codegen_flags: <defaults>
</compile_context>

<pallas_src>
import functools
import math

import jax
import jax.numpy as jnp
import numpy as np
from jax.experimental import pallas as pl
from jax.experimental.pallas import tpu as pltpu


def _round_up(n, m):
    return ((n + m - 1) // m) * m


def _default_tile_rows(n_rows, width):
    """Rows per block: ~1 MiB blocks (measured DMA sweet spot), >=4 grid steps when possible."""
    row_bytes = 4 * width
    target = max(8, (1 << 20) // row_bytes)      # ~1 MiB per x block
    floor = max(8, (256 << 10) // row_bytes)     # never shrink blocks below ~256 KiB
    tile = target
    quarter = -(-n_rows // 4)
    if quarter >= floor:                         # keep >=4 steps (v7x megacore + pipeline depth)
        tile = min(tile, quarter)
    tile = min(tile, n_rows)
    return max(8, _round_up(tile, 8))


def _st_pe_kernel(idx_ref, x_ref, pe_ref, *rest, n_idx_cols, drop_p):
    """One (tile, width) block: gather pe rows via one-hot @ pe on the MXU, add, dropout."""
    if drop_p > 0.0:
        bits_ref, out_ref = rest
    else:
        (out_ref,) = rest

    tile = x_ref.shape[0]
    k_total = pe_ref.shape[0]                    # = n_idx_cols * max_len (packed pe rows)

    # idx_ref[:, j] already carries the +j*max_len band offset (added in the wrapper),
    # so one iota over the packed pe rows builds the (block-diagonal) one-hot directly.
    # NOTE: out-of-range / negative x_st gives an all-zero one-hot row (adds 0) instead
    # of raising like torch's pe[x_st] indexing would.
    cols = jax.lax.broadcasted_iota(jnp.int32, (tile, k_total), 1)
    hit = cols == idx_ref[:, 0:1]
    for j in range(1, n_idx_cols):
        hit = jnp.logical_or(hit, cols == idx_ref[:, j:j + 1])
    onehot = hit.astype(pe_ref.dtype)

    # Gather-as-matmul; f32 on purpose (HBM-bound kernel, the MXU slot is not binding).
    gathered = jnp.dot(onehot, pe_ref[...], preferred_element_type=jnp.float32)
    y = x_ref[...].astype(jnp.float32) + gathered

    if drop_p > 0.0:
        # torch.nn.Dropout(p): zero each element w.p. p, scale survivors by 1/(1-p).
        # Integer-domain keep test on pre-generated uint32 bits, P(keep) = 1 - p.
        thresh = jnp.uint32(min(int(drop_p * (1 << 32)), (1 << 32) - 1))
        keep = bits_ref[...] >= thresh
        y = jnp.where(keep, y * (1.0 / (1.0 - drop_p)), 0.0)

    out_ref[...] = y.astype(out_ref.dtype)


def st_positional_encoding(x, x_st, pe, *, p=0.0, training=False, rng_key=None,
                           tile_rows=None):
    """x: (1, S, D) ; x_st: (S,) int indices < max_len ; pe: (max_len, D).

    Returns (S, D) = (x + pe[x_st]).squeeze(0) followed by nn.Dropout(p) when training.
    """
    _, S, D = x.shape
    max_len = pe.shape[0]
    drop_p = float(p) if training else 0.0

    x2d = x[0]                                   # squeeze the leading batch-1 dim
    idx = x_st.astype(jnp.int32)

    # Lane-dense presentation for narrow d_model: flatten (S, D) -> (S*D/128, 128)
    # (row-major contiguous, free) and gather through a block-diagonal pe table so
    # output stores are full 128-lane vst instead of D/128-utilized masked stores.
    packed = (D < 128) and (128 % D == 0) and ((S * D) % 128 == 0)
    if packed:
        k = 128 // D
        n_rows, width = (S * D) // 128, 128
        x_in = x2d.reshape(n_rows, width)
        idx_in = (idx.reshape(n_rows, k)
                  + (jnp.arange(k, dtype=jnp.int32) * max_len)[None, :])
        pe_in = jnp.zeros((k * max_len, width), pe.dtype)
        for j in range(k):
            pe_in = pe_in.at[j * max_len:(j + 1) * max_len, j * D:(j + 1) * D].set(pe)
    else:
        k = 1
        n_rows, width = S, D
        x_in = x2d
        idx_in = idx.reshape(S, 1)
        pe_in = pe

    tile = tile_rows if tile_rows is not None else _default_tile_rows(n_rows, width)
    tile = max(8, _round_up(min(tile, _round_up(n_rows, 8)), 8))
    grid = (pl.cdiv(n_rows, tile),)

    in_arrays = [idx_in, x_in, pe_in]
    in_specs = [
        pl.BlockSpec((tile, k), lambda i: (i, 0)),           # band-offset indices
        pl.BlockSpec((tile, width), lambda i: (i, 0)),       # x block
        # pe table: constant index_map -> DMA'd once, stays VMEM-resident.
        # TODO(synk): pipeline_mode=pl.Buffered(1) would drop its redundant 2nd buffer.
        pl.BlockSpec((pe_in.shape[0], width), lambda i: (0, 0)),
    ]
    if drop_p > 0.0:
        key = rng_key if rng_key is not None else jax.random.PRNGKey(0)
        bits = jax.random.bits(key, (n_rows, width), dtype=jnp.uint32)
        in_arrays.append(bits)
        in_specs.append(pl.BlockSpec((tile, width), lambda i: (i, 0)))

    n_streams = 3 if drop_p > 0.0 else 2                     # x + out (+ dropout bits)
    cost = pl.CostEstimate(
        flops=2 * n_rows * pe_in.shape[0] * width,
        transcendentals=0,
        bytes_accessed=int(n_streams * n_rows * width * 4
                           + pe_in.size * 4 + idx_in.size * 4),
    )

    out = pl.pallas_call(
        functools.partial(_st_pe_kernel, n_idx_cols=k, drop_p=drop_p),
        out_shape=jax.ShapeDtypeStruct((n_rows, width), x.dtype),
        grid=grid,
        in_specs=in_specs,
        out_specs=pl.BlockSpec((tile, width), lambda i: (i, 0)),
        compiler_params=pltpu.CompilerParams(dimension_semantics=("parallel",)),
        cost_estimate=cost,
    )(*in_arrays)

    return out.reshape(S, D) if packed else out


def make_pe(d_model, max_len=50):
    """Deterministic PE buffer, identical to the torch __init__."""
    position = np.arange(max_len, dtype=np.float32)[:, None]
    div_term = np.exp(np.arange(0, d_model, 2, dtype=np.float32)
                      * -(math.log(10000.0) / d_model))
    pe = np.zeros((max_len, d_model), dtype=np.float32)
    pe[:, 0::2] = np.sin(position * div_term)
    pe[:, 1::2] = np.cos(position * div_term)
    return jnp.asarray(pe)


if __name__ == "__main__":
    key = jax.random.PRNGKey(0)
    kx, ki, kd = jax.random.split(key, 3)

    # --- lane-packed path (d_model < 128): d_model=32, seq=88 -> 22 packed rows of 128 ---
    d_model, max_len, seq, p_drop = 32, 50, 88, 0.1
    x = jax.random.normal(kx, (1, seq, d_model), dtype=jnp.float32)
    x_st = jax.random.randint(ki, (seq,), 0, max_len, dtype=jnp.int32)
    pe = make_pe(d_model, max_len)
    ref = np.asarray(x[0]) + np.asarray(pe)[np.asarray(x_st)]

    # Eval mode (dropout identity); tile_rows=8 -> 3 grid steps incl. a masked partial block.
    out = st_positional_encoding(x, x_st, pe, p=p_drop, training=False, tile_rows=8)
    out = np.asarray(jax.block_until_ready(out))
    assert out.shape == (seq, d_model)
    np.testing.assert_allclose(out, ref, rtol=1e-5, atol=1e-5)

    # Training mode: survivors are scaled by 1/(1-p), dropped elements are exactly 0.
    out_tr = st_positional_encoding(x, x_st, pe, p=p_drop, training=True,
                                    rng_key=kd, tile_rows=8)
    out_tr = np.asarray(jax.block_until_ready(out_tr))
    assert out_tr.shape == (seq, d_model)
    kept = out_tr != 0.0
    np.testing.assert_allclose(out_tr[kept], (ref / (1.0 - p_drop))[kept],
                               rtol=1e-5, atol=1e-5)

    # --- plain path (d_model >= 128): d_model=256, seq=40, single lane-dense block ---
    d_model2, seq2 = 256, 40
    x2 = jax.random.normal(kx, (1, seq2, d_model2), dtype=jnp.float32)
    x_st2 = jax.random.randint(ki, (seq2,), 0, max_len, dtype=jnp.int32)
    pe2 = make_pe(d_model2, max_len)
    out2 = np.asarray(jax.block_until_ready(
        st_positional_encoding(x2, x_st2, pe2, p=p_drop, training=False)))
    ref2 = np.asarray(x2[0]) + np.asarray(pe2)[np.asarray(x_st2)]
    np.testing.assert_allclose(out2, ref2, rtol=1e-5, atol=1e-5)

    print("KERNEL_OK")
</pallas_src>

<mosaic_0001>
module attributes {stable_mosaic.version = 11 : i64} {
  func.func @_st_pe_kernel(%arg0: i32, %arg1: memref<8x4xi32, #tpu.memory_space<vmem>>, %arg2: memref<8x128xf32, #tpu.memory_space<vmem>>, %arg3: memref<200x128xf32, #tpu.memory_space<vmem>>, %arg4: memref<8x128xf32, #tpu.memory_space<vmem>>) attributes {dimension_semantics = [#tpu.dimension_semantics<parallel>], iteration_bounds = array<i64: 3>, scalar_prefetch = 0 : i64, scratch_operands = 0 : i64, tpu.core_type = #tpu.core_type<tc>, window_params = [{transform_indices = @transform_0, window_bounds = array<i64: 8, 4>}, {transform_indices = @transform_1, window_bounds = array<i64: 8, 128>}, {pipeline_mode = #tpu.pipeline_mode<synchronous>, transform_indices = @transform_2, window_bounds = array<i64: 200, 128>}, {transform_indices = @transform_3, window_bounds = array<i64: 8, 128>}]} {
    %0 = tpu.iota {dimensions = array<i32: 1>} : vector<8x200xi32>
    %c0 = arith.constant 0 : index
    %c0_0 = arith.constant 0 : index
    %1 = vector.load %arg1[%c0, %c0_0] : memref<8x4xi32, #tpu.memory_space<vmem>>, vector<8x1xi32>
    %2 = vector.broadcast %1 : vector<8x1xi32> to vector<8x200xi32>
    %3 = arith.cmpi eq, %0, %2 : vector<8x200xi32>
    %c0_1 = arith.constant 0 : index
    %c1 = arith.constant 1 : index
    %4 = vector.load %arg1[%c0_1, %c1] : memref<8x4xi32, #tpu.memory_space<vmem>>, vector<8x1xi32>
    %5 = vector.broadcast %4 : vector<8x1xi32> to vector<8x200xi32>
    %6 = arith.cmpi eq, %0, %5 : vector<8x200xi32>
    %7 = arith.ori %3, %6 : vector<8x200xi1>
    %c0_2 = arith.constant 0 : index
    %c2 = arith.constant 2 : index
    %8 = vector.load %arg1[%c0_2, %c2] : memref<8x4xi32, #tpu.memory_space<vmem>>, vector<8x1xi32>
    %9 = vector.broadcast %8 : vector<8x1xi32> to vector<8x200xi32>
    %10 = arith.cmpi eq, %0, %9 : vector<8x200xi32>
    %11 = arith.ori %7, %10 : vector<8x200xi1>
    %c0_3 = arith.constant 0 : index
    %c3 = arith.constant 3 : index
    %12 = vector.load %arg1[%c0_3, %c3] : memref<8x4xi32, #tpu.memory_space<vmem>>, vector<8x1xi32>
    %13 = vector.broadcast %12 : vector<8x1xi32> to vector<8x200xi32>
    %14 = arith.cmpi eq, %0, %13 : vector<8x200xi32>
    %15 = arith.ori %11, %14 : vector<8x200xi1>
    %16 = arith.extui %15 : vector<8x200xi1> to vector<8x200xi32>
    %17 = arith.sitofp %16 : vector<8x200xi32> to vector<8x200xf32>
    %c0_4 = arith.constant 0 : index
    %c0_5 = arith.constant 0 : index
    %18 = vector.load %arg3[%c0_4, %c0_5] : memref<200x128xf32, #tpu.memory_space<vmem>>, vector<200x128xf32>
    %cst = arith.constant dense<0.000000e+00> : vector<8x128xf32>
    %19 = tpu.matmul %17, %18, %cst {dimension_numbers = #tpu.dot_dimension_numbers<[1], [0], [0], [1], [0, 0, 1, 1], [], []>} : vector<8x200xf32>, vector<200x128xf32>, vector<8x128xf32> -> vector<8x128xf32>
    %c0_6 = arith.constant 0 : index
    %c0_7 = arith.constant 0 : index
    %20 = vector.load %arg2[%c0_6, %c0_7] : memref<8x128xf32, #tpu.memory_space<vmem>>, vector<8x128xf32>
    %21 = arith.addf %20, %19 : vector<8x128xf32>
    %c0_8 = arith.constant 0 : index
    %c0_9 = arith.constant 0 : index
    %22 = vector.load %arg4[%c0_8, %c0_9] : memref<8x128xf32, #tpu.memory_space<vmem>>, vector<8x128xf32>
    tpu.vector_store %arg4[%c0_8, %c0_9], %21 {strides = array<i32>} : memref<8x128xf32, #tpu.memory_space<vmem>>, vector<8x128xf32>,
    return
  }
  func.func @transform_0(%arg0: i32) -> (i32, i32) {
    %c0_i32 = arith.constant 0 : i32
    %c0_i32_0 = arith.constant 0 : i32
    return %arg0, %c0_i32 : i32, i32
  }
  func.func @transform_1(%arg0: i32) -> (i32, i32) {
    %c0_i32 = arith.constant 0 : i32
    %c0_i32_0 = arith.constant 0 : i32
    return %arg0, %c0_i32 : i32, i32
  }
  func.func @transform_2(%arg0: i32) -> (i32, i32) {
    %c0_i32 = arith.constant 0 : i32
    %c0_i32_0 = arith.constant 0 : i32
    %c0_i32_1 = arith.constant 0 : i32
    return %c0_i32, %c0_i32_0 : i32, i32
  }
  func.func @transform_3(%arg0: i32) -> (i32, i32) {
    %c0_i32 = arith.constant 0 : i32
    %c0_i32_0 = arith.constant 0 : i32
    return %arg0, %c0_i32 : i32, i32
  }
}

</mosaic_0001>

<llo_original>
// kernel: tpu_custom_call.1
$region0: #{tpu_custom_call.1}
  #allocation0 [shape = 'u32[]', space=smem, size = 0x4, offset = 0x4, fixed_abs, tag = 'smem constant byte address 0x4 - core index']
  #allocation1 [shape = 'u32[144,128]{1,0:T(1,128)}', space=vmem, size = 0x12000, scoped, tag = 'internal scratch']
  %s0 = inlined_call_operand.vmem [shape: s32[22,4], index: 0, kind: input, shape index: {}]
  %s1 = inlined_call_operand.vmem [shape: f32[22,128], index: 1, kind: input, shape index: {}]
  %s2 = inlined_call_operand.hbm [shape: f32[200,128], index: 2, kind: input, shape index: {}]
  %s3 = inlined_call_operand.hbm [shape: f32[22,128], index: 3, kind: output, shape index: {}]
  %s4 = sld [smem:[#allocation0]]
  $region49: #{tpu_custom_call.1} parent=0
    _
  %s6 = ssub.s32 1, %s4
  %s7 = scalar_select 0, %s6, %s4
  $region1: #{tpu_custom_call.1} parent=0
    #allocation2 [shape = 'u8[102400]{0}', space=vmem, size = 0x19000, scoped, tag = 'input window, operand 2, single buffered']
    #allocation3 [shape = 's32[2]{0}', space=sflag, size = 0x8, scoped, tag = 'scoped memory for tpu_custom_call.1']
    #allocation4 [shape = 's32[2]{0}', space=sflag, size = 0x8, scoped, tag = 'scoped memory for tpu_custom_call.1']
    #allocation5 [shape = 'u8[8192]{0}', space=vmem, size = 0x2000, scoped, tag = 'output window, operand 0']
    %8 = vsyncpa [#allocation3], 0
    %9 = vsyncpa [#allocation4], 0
    %s10 = scalar_lea.sflag [#allocation4], 1
    %11 = vsyncpa %s10, 0
    loop: start=0, step=1, limit=5
    $region2: #{tpu_custom_call.1} parent=1 // loop_pre_header
      _
    $region3: #{tpu_custom_call.1} parent=1 // loop_header
      %s13 = sphi 0, %s17
      %p14 = scmp.ge.s32.totalorder %s13, 5
      %s23 = sphi 0, %s25
      %s26 = sphi 0, %s23
      %s27 = sphi 0, %s26
      %s43 = sphi 0, %s27
      %s49 = sphi 0, %s51
      %s52 = sphi 0, %s49
      %s53 = sphi 0, %s52
      %s69 = sphi 0, %s53
      %s73 = sphi 0, %s73
      %s75 = sphi 0, %s73
      %s76 = sphi 0, %s75
      %s90 = sphi 0, %s76
      %s96 = sphi 0, %s98
      %s99 = sphi 0, %s96
      %s100 = sphi 0, %s99
      %s116 = sphi 0, %s100
    $region4: #{tpu_custom_call.1} parent=1 // loop_header_branch
      %16 = sbr.rel (%p14) target = $region8
    $region5: #{tpu_custom_call.1} parent=1 // loop_body
      %s18 = ssub.s32 %s13, 1
      %s19 = ssub.s32 %s13, 2
      %s20 = sadd.s32 %s13, 1
      %s21 = ssub.s32 %s13, %s20
      %p22 = scmp.eq.s32.totalorder %s21, 0
      %s24 = sadd.s32 %s23, 1
      %s25 = scalar_select %p22, %s23, %s24
      %p28 = pneg %p22
      %p29 = scmp.eq.s32.totalorder %s13, 2
      %p30 = por %p28, %p29
      %p31 = scmp.ne.s32.totalorder %s23, %s26
      %p32 = scmp.eq.s32.totalorder %s13, 0
      %p33 = por %p31, %p32
      %p34 = scmp.ne.s32.totalorder %s23, %s26
      %p35 = scmp.eq.s32.totalorder %s18, 2
      %p36 = por %p34, %p35
      %p37 = scmp.ne.s32.totalorder %s26, %s27
      %p38 = scmp.eq.s32.totalorder %s18, 0
      %p39 = por %p37, %p38
      %p40 = scmp.ne.s32.totalorder %s26, %s27
      %p41 = scmp.eq.s32.totalorder %s19, 2
      %p42 = por %p40, %p41
      %p44 = scmp.ne.s32.totalorder %s27, %s43
      %p45 = scmp.eq.s32.totalorder %s19, 0
      %p46 = por %p44, %p45
      %s47 = ssub.s32 %s13, %s20
      %p48 = scmp.eq.s32.totalorder %s47, 0
      %s50 = sadd.s32 %s49, 1
      %s51 = scalar_select %p48, %s49, %s50
      %p54 = pneg %p48
      %p55 = scmp.eq.s32.totalorder %s13, 2
      %p56 = por %p54, %p55
      %p57 = scmp.ne.s32.totalorder %s49, %s52
      %p58 = scmp.eq.s32.totalorder %s13, 0
      %p59 = por %p57, %p58
      %p60 = scmp.ne.s32.totalorder %s49, %s52
      %p61 = scmp.eq.s32.totalorder %s18, 2
      %p62 = por %p60, %p61
      %p63 = scmp.ne.s32.totalorder %s52, %s53
      %p64 = scmp.eq.s32.totalorder %s18, 0
      %p65 = por %p63, %p64
      %p66 = scmp.ne.s32.totalorder %s52, %s53
      %p67 = scmp.eq.s32.totalorder %s19, 2
      %p68 = por %p66, %p67
      %p70 = scmp.ne.s32.totalorder %s53, %s69
      %p71 = scmp.eq.s32.totalorder %s19, 0
      %p72 = por %p70, %p71
      %s74 = sadd.s32 %s73, 1
      %p77 = scmp.eq.s32.totalorder %s13, 2
      %p78 = scmp.ne.s32.totalorder %s73, %s75
      %p79 = scmp.eq.s32.totalorder %s13, 0
      %p80 = por %p78, %p79
      %p81 = scmp.ne.s32.totalorder %s73, %s75
      %p82 = scmp.eq.s32.totalorder %s18, 2
      %p83 = por %p81, %p82
      %p84 = scmp.ne.s32.totalorder %s75, %s76
      %p85 = scmp.eq.s32.totalorder %s18, 0
      %p86 = por %p84, %p85
      %p87 = scmp.ne.s32.totalorder %s75, %s76
      %p88 = scmp.eq.s32.totalorder %s19, 2
      %p89 = por %p87, %p88
      %p91 = scmp.ne.s32.totalorder %s76, %s90
      %p92 = scmp.eq.s32.totalorder %s19, 0
      %p93 = por %p91, %p92
      %s94 = ssub.s32 %s13, %s20
      %p95 = scmp.eq.s32.totalorder %s94, 0
      %s97 = sadd.s32 %s96, 1
      %s98 = scalar_select %p95, %s96, %s97
      %p101 = pneg %p95
      %p102 = scmp.eq.s32.totalorder %s13, 2
      %p103 = por %p101, %p102
      %p104 = scmp.ne.s32.totalorder %s96, %s99
      %p105 = scmp.eq.s32.totalorder %s13, 0
      %p106 = por %p104, %p105
      %p107 = scmp.ne.s32.totalorder %s96, %s99
      %p108 = scmp.eq.s32.totalorder %s18, 2
      %p109 = por %p107, %p108
      %p110 = scmp.ne.s32.totalorder %s99, %s100
      %p111 = scmp.eq.s32.totalorder %s18, 0
      %p112 = por %p110, %p111
      %p113 = scmp.ne.s32.totalorder %s99, %s100
      %p114 = scmp.eq.s32.totalorder %s19, 2
      %p115 = por %p113, %p114
      %p117 = scmp.ne.s32.totalorder %s100, %s116
      %p118 = scmp.eq.s32.totalorder %s19, 0
      %p119 = por %p117, %p118
      %p120 = scmp.le.s32.totalorder 1, %s13
      %p121 = scmp.lt.s32.totalorder %s13, 4
      %p122 = pnand %p120, %p121
      %p123 = pneg %p122
      // Predicated region
      $region9: #{tpu_custom_call.1} parent=5 // pred_check
        _
      $region10: #{tpu_custom_call.1} parent=5 // pred_check_branch
        %125 = sbr.rel (%p122) target = $region12
      $region11: #{tpu_custom_call.1} parent=5 // pred_region
        %s126 = ssub.s32 %s13, 1
        // Predicated region
        $region13: #{tpu_custom_call.1} parent=11 // pred_check
          %p127 = pneg %p86
        $region14: #{tpu_custom_call.1} parent=11 // pred_check_branch
          %129 = sbr.rel (%p127) target = $region16
        $region15: #{tpu_custom_call.1} parent=11 // pred_region
          %s131 = ssub.s32 3200, 3200
          %132 = vsyncadd [#allocation3], %s131
          %s133 = sshll.u32 [#allocation2], 4
          %s134 = int_to_ptr.vmem [resolvable:$true] %s133
          %139 = dma.hbm_to_vmem [thread:$0]  %s2, 3200, %s134, [#allocation3], 128, 128, 8
        $region16: #{tpu_custom_call.1} parent=11 // pred_fallthru
          _
      $region12: #{tpu_custom_call.1} parent=5 // pred_fallthru
        _
      %p140 = scmp.lt.s32.totalorder %s13, 3
      // Predicated region
      $region17: #{tpu_custom_call.1} parent=5 // pred_check
        %p141 = pneg %p140
      $region18: #{tpu_custom_call.1} parent=5 // pred_check_branch
        %143 = sbr.rel (%p141) target = $region20
      $region19: #{tpu_custom_call.1} parent=5 // pred_region
        // Predicated region
        $region21: #{tpu_custom_call.1} parent=19 // pred_check
          %p144 = pneg %p33
        $region22: #{tpu_custom_call.1} parent=19 // pred_check_branch
          %146 = sbr.rel (%p144) target = $region24
        $region23: #{tpu_custom_call.1} parent=19 // pred_region
          %p147 = scmp.lt.s32.totalorder %s13, 2
          %s148 = scalar_select %p147, %s13, 2
          %s149 = smul.addr %s148, 8
          %s150 = scalar_lea.vmem %s0, %s149
        $region24: #{tpu_custom_call.1} parent=19 // pred_fallthru
          _
        // Predicated region
        $region25: #{tpu_custom_call.1} parent=19 // pred_check
          %p151 = pneg %p59
        $region26: #{tpu_custom_call.1} parent=19 // pred_check_branch
          %153 = sbr.rel (%p151) target = $region28
        $region27: #{tpu_custom_call.1} parent=19 // pred_region
          %p154 = scmp.lt.s32.totalorder %s13, 2
          %s155 = scalar_select %p154, %s13, 2
          %s156 = smul.addr %s155, 8
          %s157 = scalar_lea.vmem %s1, %s156
        $region28: #{tpu_custom_call.1} parent=19 // pred_fallthru
          _
      $region20: #{tpu_custom_call.1} parent=5 // pred_fallthru
        _
      %p158 = scmp.le.s32.totalorder 1, %s13
      %p159 = scmp.lt.s32.totalorder %s13, 4
      %p160 = pnand %p158, %p159
      %p161 = pneg %p160
      // Predicated region
      $region29: #{tpu_custom_call.1} parent=5 // pred_check
        _
      $region30: #{tpu_custom_call.1} parent=5 // pred_check_branch
        %163 = sbr.rel (%p160) target = $region32
      $region31: #{tpu_custom_call.1} parent=5 // pred_region
        %s164 = ssub.s32 %s13, 1
        // Predicated region
        $region33: #{tpu_custom_call.1} parent=31 // pred_check
          %p165 = pneg %p86
        $region34: #{tpu_custom_call.1} parent=31 // pred_check_branch
          %167 = sbr.rel (%p165) target = $region36
        $region35: #{tpu_custom_call.1} parent=31 // pred_region
          %168 = dma.done [#allocation3], 3200
        $region36: #{tpu_custom_call.1} parent=31 // pred_fallthru
          _
        %p169 = scmp.lt.s32.totalorder %s18, 2
        %s170 = scalar_select %p169, %s18, 2
        %s171 = smul.addr %s170, 8
        %s172 = scalar_lea.vmem %s0, %s171
        %p173 = pneg %p39
        %p174 = pneg %p36
        %p175 = scmp.lt.s32.totalorder %s18, 2
        %s176 = scalar_select %p175, %s18, 2
        %s177 = smul.addr %s176, 8
        %s178 = scalar_lea.vmem %s1, %s177
        %p179 = pneg %p65
        %p180 = pneg %p62
        %p181 = pneg %p86
        %p182 = pneg %p83
        %p183 = pneg %p112
        %p184 = pneg %p109
        %s185 = sand.u32 %s99, 1
        %s186 = scalar_lea.sflag [#allocation4], %s185
        %s187 = sand.u32 %s99, 1
        %s188 = smul.addr %s187, 8
        %s189 = scalar_lea.vmem [#allocation5], %s188
        %p190 = scmp.lt.s32.totalorder %s18, 2
        %s191 = scalar_select %p190, %s18, 2
        %s192 = smul.addr %s191, 8
        %s193 = scalar_lea.vmem %s0, %s192
        %p194 = scmp.lt.s32.totalorder %s18, 2
        %s195 = scalar_select %p194, %s18, 2
        %s196 = smul.addr %s195, 8
        %s197 = scalar_lea.vmem %s1, %s196
        %v198 = vlaneseq
        %v199 = vand.u32 %v198, 127
        %v200 = vadd.s32 %v199, 128
        %v201 = vld [vmem:[%s193] sm:$0xff]
        %202 = vset.pattern.permute.xlu0 0
        %203 = vperm.xlu0 %202, %v201
        %v204 = vpop.permute.xlu0 %203
        %vm205 = vcmp.eq.s32.totalorder %v199, %v204
        %vm206 = vcmp.eq.s32.totalorder %v200, %v204
        %207 = vset.pattern.permute.xlu0 1
        %208 = vperm.xlu0 %207, %v201
        %v209 = vpop.permute.xlu0 %208
        %vm210 = vcmp.eq.s32.totalorder %v199, %v209
        %vm211 = vcmp.eq.s32.totalorder %v200, %v209
        %vm212 = vmor %vm205, %vm210
        %vm213 = vmor %vm206, %vm211
        %214 = vset.pattern.permute.xlu0 2
        %215 = vperm.xlu0 %214, %v201
        %v216 = vpop.permute.xlu0 %215
        %vm217 = vcmp.eq.s32.totalorder %v199, %v216
        %vm218 = vcmp.eq.s32.totalorder %v200, %v216
        %vm219 = vmor %vm212, %vm217
        %vm220 = vmor %vm213, %vm218
        %221 = vset.pattern.permute.xlu0 3
        %222 = vperm.xlu0 %221, %v201
        %v223 = vpop.permute.xlu0 %222
        %vm224 = vcmp.eq.s32.totalorder %v199, %v223
        %vm225 = vcmp.eq.s32.totalorder %v200, %v223
        %vm226 = vmor %vm219, %vm224
        %vm227 = vmor %vm220, %vm225
        %v228 = vsel %vm226, 1, 0
        %v229 = vsel %vm227, 1, 0
        %v230 = vcvt.s32.f32 %v228
        %v231 = vcvt.s32.f32 %v229
        %v232 = vld [vmem:[#allocation2] sm:$0xff]
        %v233 = vld [vmem:[#allocation2 + $0x8] sm:$0xff]
        %v234 = vld [vmem:[#allocation2 + $0x10] sm:$0xff]
        %v235 = vld [vmem:[#allocation2 + $0x18] sm:$0xff]
        %v236 = vld [vmem:[#allocation2 + $0x20] sm:$0xff]
        %v237 = vld [vmem:[#allocation2 + $0x28] sm:$0xff]
        %v238 = vld [vmem:[#allocation2 + $0x30] sm:$0xff]
        %v239 = vld [vmem:[#allocation2 + $0x38] sm:$0xff]
        %v240 = vld [vmem:[#allocation2 + $0x40] sm:$0xff]
        %v241 = vld [vmem:[#allocation2 + $0x48] sm:$0xff]
        %v242 = vld [vmem:[#allocation2 + $0x50] sm:$0xff]
        %v243 = vld [vmem:[#allocation2 + $0x58] sm:$0xff]
        %v244 = vld [vmem:[#allocation2 + $0x60] sm:$0xff]
        %v245 = vld [vmem:[#allocation2 + $0x68] sm:$0xff]
        %v246 = vld [vmem:[#allocation2 + $0x70] sm:$0xff]
        %v247 = vld [vmem:[#allocation2 + $0x78] sm:$0xff]
        %v248 = vld [vmem:[#allocation2 + $0x80] sm:$0xff]
        %v249 = vld [vmem:[#allocation2 + $0x88] sm:$0xff]
        %v250 = vld [vmem:[#allocation2 + $0x90] sm:$0xff]
        %v251 = vld [vmem:[#allocation2 + $0x98] sm:$0xff]
        %v252 = vld [vmem:[#allocation2 + $0xa0] sm:$0xff]
        %v253 = vld [vmem:[#allocation2 + $0xa8] sm:$0xff]
        %v254 = vld [vmem:[#allocation2 + $0xb0] sm:$0xff]
        %v255 = vld [vmem:[#allocation2 + $0xb8] sm:$0xff]
        %v256 = vld [vmem:[#allocation2 + $0xc0] sm:$0xff]
        %vm257 = vcmask 588800
        %v259 = vsel %vm257, %v231, 0
        %261 = vmatprep.subr.mxu0 0.0
        %262 = vmatpush1.msra.mxu0 %v232
        %263 = vmatprep.subr.mxu0 0.0
        %264 = vmatpush1.msra.mxu0 %v233
        %265 = vmatprep.subr.mxu0 0.0
        %266 = vmatpush1.msra.mxu0 %v234
        %267 = vmatprep.subr.mxu0 0.0
        %268 = vmatpush1.msra.mxu0 %v235
        %269 = vmatprep.subr.mxu0 0.0
        %270 = vmatpush1.msra.mxu0 %v236
        %271 = vmatprep.subr.mxu0 0.0
        %272 = vmatpush1.msra.mxu0 %v237
        %273 = vmatprep.subr.mxu0 0.0
        %274 = vmatpush1.msra.mxu0 %v238
        %275 = vmatprep.subr.mxu0 0.0
        %276 = vmatpush1.msra.mxu0 %v239
        %277 = vmatprep.subr.mxu0 0.0
        %278 = vmatpush1.msra.mxu0 %v240
        %279 = vmatprep.subr.mxu0 0.0
        %280 = vmatpush1.msra.mxu0 %v241
        %281 = vmatprep.subr.mxu0 0.0
        %282 = vmatpush1.msra.mxu0 %v242
        %283 = vmatprep.subr.mxu0 0.0
        %284 = vmatpush1.msra.mxu0 %v243
        %285 = vmatprep.subr.mxu0 0.0
        %286 = vmatpush1.msra.mxu0 %v244
        %287 = vmatprep.subr.mxu0 0.0
        %288 = vmatpush1.msra.mxu0 %v245
        %289 = vmatprep.subr.mxu0 0.0
        %290 = vmatpush1.msra.mxu0 %v246
        %291 = vmatprep.subr.mxu0 0.0
        %292 = vmatpush1.msra.mxu0 %v247
        %293 = vmatprep.subr.mxu0 0.0
        %294 = vmatpush1.msra.mxu0 %v248
        %295 = vmatprep.subr.mxu0 0.0
        %296 = vmatpush1.msra.mxu0 %v249
        %297 = vmatprep.subr.mxu0 0.0
        %298 = vmatpush1.msra.mxu0 %v250
        %299 = vmatprep.subr.mxu0 0.0
        %300 = vmatpush1.msra.mxu0 %v251
        %301 = vmatprep.subr.mxu0 0.0
        %302 = vmatpush1.msra.mxu0 %v252
        %303 = vmatprep.subr.mxu0 0.0
        %304 = vmatpush1.msra.mxu0 %v253
        %305 = vmatprep.subr.mxu0 0.0
        %306 = vmatpush1.msra.mxu0 %v254
        %307 = vmatprep.subr.mxu0 0.0
        %308 = vmatpush1.msra.mxu0 %v255
        %309 = vmatprep.subr.mxu0 0.0
        %310 = vmatpush1.msra.mxu0 %v256
        %311 = vmatprep.subr.mxu0 0.0
        %312 = vmatpush1.msra.mxu0 0.0
        %313 = vmatprep.subr.mxu0 0.0
        %314 = vmatpush1.msra.mxu0 0.0
        %315 = vmatprep.subr.mxu0 0.0
        %316 = vmatpush1.msra.mxu0 0.0
        %317 = vmatprep.subr.mxu0 0.0
        %318 = vmatpush1.msra.mxu0 0.0
        %319 = vmatprep.subr.mxu0 0.0
        %320 = vmatpush1.msra.mxu0 0.0
        %321 = vmatprep.subr.mxu0 0.0
        %322 = vmatpush1.msra.mxu0 0.0
        %323 = vmatprep.subr.mxu0 0.0
        %324 = vmatpush1.msra.mxu0 0.0
        %325 = vmatprep.mubr.f32.mxu0 %v259
        %326 = vmatmul.mubr.f32.gmra.mrb[0].mxu0 %v230
        %v327 = vpop.f32.mrb[0].mxu0
        %v328 = vadd.f32 0.0, %v327
        %v329 = vpop.f32.mrb[0].mxu0
        %330 = vdwg.mxu0
        %v331 = vld [vmem:[%s197] sm:$0xff]
        %v332 = vadd.f32 %v331, %v328
        %333 = vst [vmem:[%s189] sm:$0xff] %v332
        %s334 = sand.u32 %s99, 1
        %s335 = scalar_lea.sflag [#allocation4], %s334
        %s336 = sand.u32 %s99, 1
        %s337 = smul.addr %s336, 8
        %s338 = scalar_lea.vmem [#allocation5], %s337
        // Predicated region
        $region37: #{tpu_custom_call.1} parent=31 // pred_check
          %p339 = pneg %p109
        $region38: #{tpu_custom_call.1} parent=31 // pred_check_branch
          %341 = sbr.rel (%p339) target = $region40
        $region39: #{tpu_custom_call.1} parent=31 // pred_region
          %s343 = ssub.s32 128, 128
          %344 = vsyncadd %s335, %s343
          %s345 = smul.addr %s18, 128
          %s346 = scalar_lea.hbm %s3, %s345
          %s348 = sshll.u32 %s338, 4
          %s349 = int_to_ptr.vmem [resolvable:$true] %s348
          %351 = dma.vmem_to_hbm [thread:$0]  %s349, 128, %s346, %s335
        $region40: #{tpu_custom_call.1} parent=31 // pred_fallthru
          _
      $region32: #{tpu_custom_call.1} parent=5 // pred_fallthru
        _
      %p352 = scmp.le.s32.totalorder 2, %s13
      // Predicated region
      $region41: #{tpu_custom_call.1} parent=5 // pred_check
        %p353 = pneg %p352
      $region42: #{tpu_custom_call.1} parent=5 // pred_check_branch
        %355 = sbr.rel (%p353) target = $region44
      $region43: #{tpu_custom_call.1} parent=5 // pred_region
        %s356 = ssub.s32 %s13, 2
        // Predicated region
        $region45: #{tpu_custom_call.1} parent=43 // pred_check
          %p357 = pneg %p115
        $region46: #{tpu_custom_call.1} parent=43 // pred_check_branch
          %359 = sbr.rel (%p357) target = $region48
        $region47: #{tpu_custom_call.1} parent=43 // pred_region
          %s360 = sand.u32 %s100, 1
          %s361 = scalar_lea.sflag [#allocation4], %s360
          %s362 = sand.u32 %s100, 1
          %s363 = smul.addr %s362, 8
          %s364 = scalar_lea.vmem [#allocation5], %s363
          %365 = dma.done %s361, 128
        $region48: #{tpu_custom_call.1} parent=43 // pred_fallthru
          _
      $region44: #{tpu_custom_call.1} parent=5 // pred_fallthru
        _
    $region6: #{tpu_custom_call.1} parent=1 // loop_footer
      %s17 = sadd.s32 1, %s13
    $region7: #{tpu_custom_call.1} parent=1 // loop_footer_branch
      %12 = sbr.rel target = $region3
    $region8: #{tpu_custom_call.1} parent=1 // loop_exit
      _
    %366 = vsyncpa [#allocation3], 1
    %s367 = scalar_lea.sflag [#allocation3], 1
    %368 = vsyncpa %s367, 1
    %369 = vsyncpa [#allocation4], 1
    %s370 = scalar_lea.sflag [#allocation4], 1
    %371 = vsyncpa %s370, 1

</llo_original>
